<compile_context>
chip_gen: v6e
topology: v6e:2x2x1
jax: 0.10.0
libtpu: 0.0.40
codegen_flags: <defaults>
</compile_context>

<pallas_src>
import jax
import jax.numpy as jnp
from jax.experimental import pallas as pl
from jax.experimental.pallas import tpu as pltpu

_HALO_PAD = 8  # sublane-aligned halo region at the top of xbuf (>= d_conv - 1)


# --------------------------------------------------------------------------- #
# Kernel
# --------------------------------------------------------------------------- #
def _make_mamba_kernel(tile_l, tile_di, k_conv, num_di, out_dtype):
    off = _HALO_PAD
    base = off - (k_conv - 1)
    assert base >= 0 and tile_l % 8 == 0 and tile_l >= 8

    def kernel(h_ref, w_in_ref, w_conv_ref, b_conv_ref, w_out_ref, out_ref,
               xbuf_ref, halo_ref, acc_ref):
        # h_ref      : (tile_l, d_model)     bf16  current sequence tile (batch squeezed)
        # w_in_ref   : (d_model, tile_di)    bf16  in_proj.weight[:d_inner].T   (N-tiled)
        # w_conv_ref : (k_conv, tile_di)     f32   conv1d.weight[:, 0, :].T
        # b_conv_ref : (1, tile_di)          f32   conv1d.bias
        # w_out_ref  : (tile_di, d_model)    bf16  out_proj.weight.T            (K-tiled)
        # out_ref    : (tile_l, d_model)     out_dtype
        # xbuf_ref   : (off + tile_l, tile_di) f32   x slab + halo rows, this chunk
        # halo_ref   : (num_di, off, tile_di)  f32   previous L-tile's last x rows / chunk
        # acc_ref    : (tile_l, d_model)     f32   out_proj accumulator over chunks
        t = pl.program_id(1)
        di = pl.program_id(2)

        # Start of the d_inner loop for this (batch, L-tile): zero the accumulator.
        @pl.when(di == 0)
        def _():
            acc_ref[...] = jnp.zeros_like(acc_ref)

        # Halo: first L-tile of a batch element uses zero causal padding; later
        # tiles restore this chunk's halo saved by the previous L-tile.
        @pl.when(t == 0)
        def _():
            xbuf_ref[0:off, :] = jnp.zeros((off, tile_di), jnp.float32)

        @pl.when(t > 0)
        def _():
            xbuf_ref[0:off, :] = halo_ref[di]

        # in_proj (x half, this d_inner chunk) on the MXU: bf16 operands, f32 acc.
        x = jnp.dot(h_ref[...], w_in_ref[...],
                    preferred_element_type=jnp.float32)          # (tile_l, tile_di)
        xbuf_ref[off:off + tile_l, :] = x                        # sublane-aligned store

        # Save this tile's last `off` x rows as the next L-tile's halo
        # (aligned: tile_l % 8 == 0 and off == 8).
        halo_ref[di] = xbuf_ref[tile_l:tile_l + off, :]

        # Causal depthwise conv: out[t] = bias + sum_k w[k] * x[t + k - (K-1)].
        wk = w_conv_ref[...]                                     # (k_conv, tile_di)
        xc = b_conv_ref[...]                                     # (1, tile_di) -> bcast
        for k in range(k_conv):                                  # K = 4, static unroll
            xc = xc + xbuf_ref[base + k:base + k + tile_l, :] * wk[k:k + 1, :]

        # SiLU in f32 (sigmoid uses the EUP slot).
        xact = xc * jax.nn.sigmoid(xc)                           # (tile_l, tile_di)

        # out_proj partial product for this chunk; accumulate in f32.
        acc_ref[...] += jnp.dot(xact.astype(jnp.bfloat16), w_out_ref[...],
                                preferred_element_type=jnp.float32)

        # Last chunk: emit the output tile (bf16 by default -> half the writeback).
        @pl.when(di == num_di - 1)
        def _():
            out_ref[...] = acc_ref[...].astype(out_dtype)

    return kernel


# --------------------------------------------------------------------------- #
# Tiling helpers
# --------------------------------------------------------------------------- #
def _round_up(x, m):
    return (x + m - 1) // m * m


def _choose_tile_l(seqlen, max_tile):
    """8-aligned sequence tile (MXU-friendly when possible); pads if no divisor."""
    max_tile = max(8, (max_tile // 8) * 8)
    if seqlen <= max_tile:
        t = _round_up(seqlen, 8)
        return t, t
    for align in (256, 128, 8):                  # prefer MXU / lane-friendly tiles
        t = (max_tile // align) * align
        while t >= align:
            if seqlen % t == 0:
                return t, seqlen
            t -= align
    return max_tile, _round_up(seqlen, max_tile)  # pad the tail, slice afterwards


def _choose_tile_di(d_inner, max_tile):
    """d_inner chunk: a multiple of 128 (BlockSpec lane rule) or the full width."""
    if d_inner <= max_tile or d_inner % 128 != 0:
        return d_inner
    t = (min(max_tile, d_inner) // 128) * 128
    while t >= 128:
        if d_inner % t == 0:
            return t
        t -= 128
    return d_inner


def _default_vmem_limit_bytes():
    """~75% of physical VMEM: ~48 MiB on v7x (64 MiB), ~96 MiB on v5e/v6e (128 MiB)."""
    try:
        return int(pltpu.get_tpu_info().vmem_capacity_bytes) * 3 // 4
    except Exception:  # non-TPU backend / API drift: conservative v7x-safe default
        return 48 * 1024 * 1024


# --------------------------------------------------------------------------- #
# Wrapper
# --------------------------------------------------------------------------- #
def mamba_forward(h, w_in_x_t, w_conv_t, b_conv, w_out_t, *,
                  max_tile_l=512, max_tile_di=1024,
                  out_dtype=jnp.bfloat16, single_buffer_weights=True):
    """Pallas forward of the Mamba output path.

    h        : (batch, seqlen, d_model)
    w_in_x_t : (d_model, d_inner)   == in_proj.weight[:d_inner].T
    w_conv_t : (d_conv, d_inner)    == conv1d.weight[:, 0, :].T
    b_conv   : (d_inner,)           == conv1d.bias
    w_out_t  : (d_inner, d_model)   == out_proj.weight.T
    """
    batch, seqlen, d_model = h.shape
    d_inner = w_in_x_t.shape[1]
    k_conv = w_conv_t.shape[0]
    off = _HALO_PAD
    assert off >= k_conv - 1, "halo pad must cover the conv receptive field"

    tile_l, padded_len = _choose_tile_l(seqlen, max_tile_l)
    num_l = padded_len // tile_l
    tile_di = _choose_tile_di(d_inner, max_tile_di)
    num_di = d_inner // tile_di

    # bf16 activations + matmul weights (f32 accumulation inside the kernel);
    # conv weights / bias stay f32.  Casting here halves HBM DMA + VMEM blocks.
    h16 = h.astype(jnp.bfloat16)
    if padded_len != seqlen:
        h16 = jnp.pad(h16, ((0, 0), (0, padded_len - seqlen), (0, 0)))
    w_in16 = w_in_x_t.astype(jnp.bfloat16)
    w_out16 = w_out_t.astype(jnp.bfloat16)
    w_conv32 = w_conv_t.astype(jnp.float32)
    b_conv32 = jnp.asarray(b_conv, jnp.float32).reshape(1, d_inner)

    kernel = _make_mamba_kernel(tile_l, tile_di, k_conv, num_di, out_dtype)

    # Weight blocks whose index never changes don't need a second pipeline buffer.
    weights_constant = single_buffer_weights and num_di == 1

    def _w_spec(shape, index_map):
        if weights_constant:
            return pl.BlockSpec(shape, index_map, pipeline_mode=pl.Buffered(1))
        return pl.BlockSpec(shape, index_map)

    flops = (4 * batch * padded_len * d_model * d_inner
             + 2 * batch * padded_len * d_inner * k_conv)
    bytes_accessed = (
        h16.size * 2
        + batch * padded_len * d_model * jnp.dtype(out_dtype).itemsize
        + w_in16.size * 2 + w_out16.size * 2
        + w_conv32.size * 4 + b_conv32.size * 4)

    out = pl.pallas_call(
        kernel,
        out_shape=jax.ShapeDtypeStruct((batch, padded_len, d_model), out_dtype),
        grid_spec=pltpu.PrefetchScalarGridSpec(
            num_scalar_prefetch=0,
            grid=(batch, num_l, num_di),
            in_specs=[
                # h / out blocks keep the full (lane-dense) d_model as last dim.
                pl.BlockSpec((pl.Squeezed(), tile_l, d_model),
                             lambda b, t, d: (b, t, 0)),
                _w_spec((d_model, tile_di), lambda b, t, d: (0, d)),
                _w_spec((k_conv, tile_di), lambda b, t, d: (0, d)),
                _w_spec((1, tile_di), lambda b, t, d: (0, d)),
                _w_spec((tile_di, d_model), lambda b, t, d: (d, 0)),
            ],
            out_specs=pl.BlockSpec((pl.Squeezed(), tile_l, d_model),
                                   lambda b, t, d: (b, t, 0)),
            scratch_shapes=[
                pltpu.VMEM((off + tile_l, tile_di), jnp.float32),  # x slab + halo rows
                pltpu.VMEM((num_di, off, tile_di), jnp.float32),   # carried conv halo
                pltpu.VMEM((tile_l, d_model), jnp.float32),        # out_proj accumulator
            ],
        ),
        compiler_params=pltpu.CompilerParams(
            # batch is megacore-parallel; L carries the conv halo and d_inner
            # carries the out_proj accumulator -> both "arbitrary".
            dimension_semantics=("parallel", "arbitrary", "arbitrary"),
            vmem_limit_bytes=_default_vmem_limit_bytes(),
        ),
        cost_estimate=pl.CostEstimate(
            flops=flops,
            transcendentals=batch * padded_len * d_inner,
            bytes_accessed=bytes_accessed),
    )(h16, w_in16, w_conv32, b_conv32, w_out16)

    if padded_len != seqlen:
        out = out[:, :seqlen, :]
    return out


# --------------------------------------------------------------------------- #
# Reference + test harness
# --------------------------------------------------------------------------- #
def make_params(key, d_model, d_state=16, d_conv=4, expand=2):
    """Deterministic synthetic parameters matching the module's __init__ shapes."""
    d_inner = int(expand * d_model)
    k1, k2, k3, k4 = jax.random.split(key, 4)
    # in_proj: Linear(d_model -> 2*d_inner, bias=False); only the x-half reaches output
    w_in = jax.random.uniform(k1, (2 * d_inner, d_model), jnp.float32, -0.1, 0.1)
    # conv1d: depthwise, weight (d_inner, 1, d_conv), bias (d_inner,)
    w_conv = jax.random.uniform(k2, (d_inner, 1, d_conv), jnp.float32, -0.5, 0.5)
    b_conv = jax.random.uniform(k3, (d_inner,), jnp.float32, -0.5, 0.5)
    # out_proj: Linear(d_inner -> d_model, bias=False)
    w_out = jax.random.uniform(k4, (d_model, d_inner), jnp.float32, -0.1, 0.1)
    return dict(w_in=w_in, w_conv=w_conv, b_conv=b_conv, w_out=w_out)


def reference_forward(h, params):
    """Pure-JAX f32 reference of the PyTorch forward's output path."""
    d_inner = params["w_out"].shape[1]
    K = params["w_conv"].shape[2]
    L = h.shape[1]
    w_in_x = params["w_in"][:d_inner]                      # (d_inner, d_model)
    x = jnp.einsum("bld,id->bli", h, w_in_x)               # (b, l, d_inner)
    xp = jnp.pad(x, ((0, 0), (K - 1, 0), (0, 0)))          # causal left pad
    wk = params["w_conv"][:, 0, :]                         # (d_inner, K)
    xc = params["b_conv"][None, None, :]
    for k in range(K):
        xc = xc + xp[:, k:k + L, :] * wk[:, k][None, None, :]
    xact = xc * jax.nn.sigmoid(xc)
    return jnp.einsum("bli,oi->blo", xact, params["w_out"])


def _run_case(key, *, d_model, d_conv, expand, batch, seqlen,
              max_tile_l, max_tile_di):
    d_inner = int(expand * d_model)
    kp, kh = jax.random.split(key)
    params = make_params(kp, d_model, d_conv=d_conv, expand=expand)
    h = jax.random.normal(kh, (batch, seqlen, d_model), jnp.float32)

    w_in_x_t = params["w_in"][:d_inner].T                  # (d_model, d_inner)
    w_conv_t = params["w_conv"][:, 0, :].T                 # (d_conv, d_inner)
    b_conv = params["b_conv"]                              # (d_inner,)
    w_out_t = params["w_out"].T                            # (d_inner, d_model)

    out = mamba_forward(h, w_in_x_t, w_conv_t, b_conv, w_out_t,
                        max_tile_l=max_tile_l, max_tile_di=max_tile_di)
    out = jax.block_until_ready(out)

    ref = reference_forward(h, params)
    assert out.shape == ref.shape, (out.shape, ref.shape)
    # bf16 activations / matmul operands / output vs. pure-f32 reference:
    # deliberate accuracy-for-bandwidth trade-off -> loose tolerance.
    ok = jnp.allclose(out.astype(jnp.float32), ref, atol=3e-2, rtol=3e-2)
    assert ok, f"mismatch vs reference (d_model={d_model})"


if __name__ == "__main__":
    key = jax.random.PRNGKey(0)
    k1, k2 = jax.random.split(key)

    # Case A: tiny widths (d_inner fully resident -> Buffered(1) weights), an
    # awkward seqlen (12 -> padded to 16) and 2 L-tiles, exercising the conv
    # halo carry and the pad/slice path.
    _run_case(k1, d_model=32, d_conv=4, expand=2, batch=2, seqlen=12,
              max_tile_l=8, max_tile_di=1024)

    # Case B: d_inner = 256 chunked into two 128-wide pieces, exercising the
    # d_inner grid axis and the out_proj accumulator, plus the halo carry.
    _run_case(k2, d_model=128, d_conv=4, expand=2, batch=2, seqlen=16,
              max_tile_l=8, max_tile_di=128)

    print("KERNEL_OK")
</pallas_src>

<mosaic_0001>
module attributes {stable_mosaic.version = 11 : i64} {
  func.func @kernel(%arg0: i32, %arg1: i32, %arg2: i32, %arg3: memref<1x8x32xbf16, #tpu.memory_space<vmem>>, %arg4: memref<32x64xbf16, #tpu.memory_space<vmem>>, %arg5: memref<4x64xf32, #tpu.memory_space<vmem>>, %arg6: memref<1x64xf32, #tpu.memory_space<vmem>>, %arg7: memref<64x32xbf16, #tpu.memory_space<vmem>>, %arg8: memref<1x8x32xbf16, #tpu.memory_space<vmem>>, %arg9: memref<16x64xf32, #tpu.memory_space<vmem>>, %arg10: memref<1x8x64xf32, #tpu.memory_space<vmem>>, %arg11: memref<8x32xf32, #tpu.memory_space<vmem>>) attributes {dimension_semantics = [#tpu.dimension_semantics<parallel>, #tpu.dimension_semantics<arbitrary>, #tpu.dimension_semantics<arbitrary>], iteration_bounds = array<i64: 2, 2, 1>, scalar_prefetch = 0 : i64, scratch_operands = 3 : i64, tpu.core_type = #tpu.core_type<tc>, window_params = [{transform_indices = @transform_0, window_bounds = array<i64: 1, 8, 32>}, {pipeline_mode = #tpu.pipeline_mode<synchronous>, transform_indices = @transform_1, window_bounds = array<i64: 32, 64>}, {pipeline_mode = #tpu.pipeline_mode<synchronous>, transform_indices = @transform_2, window_bounds = array<i64: 4, 64>}, {pipeline_mode = #tpu.pipeline_mode<synchronous>, transform_indices = @transform_3, window_bounds = array<i64: 1, 64>}, {pipeline_mode = #tpu.pipeline_mode<synchronous>, transform_indices = @transform_4, window_bounds = array<i64: 64, 32>}, {transform_indices = @transform_5, window_bounds = array<i64: 1, 8, 32>}]} {
    %c0_i32 = arith.constant 0 : i32
    %0 = arith.cmpi eq, %arg2, %c0_i32 : i32
    %1 = arith.extui %0 : i1 to i32
    %c0_i32_0 = arith.constant 0 : i32
    %2 = arith.cmpi ne, %1, %c0_i32_0 : i32
    scf.if %2 {
      %cst_33 = arith.constant 0.000000e+00 : f32
      %57 = vector.broadcast %cst_33 : f32 to vector<8x32xf32>
      %c0_34 = arith.constant 0 : index
      %c0_35 = arith.constant 0 : index
      %58 = vector.load %arg11[%c0_34, %c0_35] : memref<8x32xf32, #tpu.memory_space<vmem>>, vector<8x32xf32>
      tpu.vector_store %arg11[%c0_34, %c0_35], %57 {strides = array<i32>} : memref<8x32xf32, #tpu.memory_space<vmem>>, vector<8x32xf32>,
    } else {
    }
    %c0_i32_1 = arith.constant 0 : i32
    %3 = arith.cmpi eq, %arg1, %c0_i32_1 : i32
    %4 = arith.extui %3 : i1 to i32
    %c0_i32_2 = arith.constant 0 : i32
    %5 = arith.cmpi ne, %4, %c0_i32_2 : i32
    scf.if %5 {
      %cst_33 = arith.constant 0.000000e+00 : f32
      %57 = vector.broadcast %cst_33 : f32 to vector<8x64xf32>
      %c0_34 = arith.constant 0 : index
      %c0_35 = arith.constant 0 : index
      %58 = vector.load %arg9[%c0_34, %c0_35] : memref<16x64xf32, #tpu.memory_space<vmem>>, vector<8x64xf32>
      tpu.vector_store %arg9[%c0_34, %c0_35], %57 {strides = array<i32>} : memref<16x64xf32, #tpu.memory_space<vmem>>, vector<8x64xf32>,
    } else {
    }
    %c0_i32_3 = arith.constant 0 : i32
    %6 = arith.cmpi sgt, %arg1, %c0_i32_3 : i32
    %7 = arith.extui %6 : i1 to i32
    %c0_i32_4 = arith.constant 0 : i32
    %8 = arith.cmpi ne, %7, %c0_i32_4 : i32
    scf.if %8 {
      %57 = arith.index_cast %arg2 : i32 to index
      %c0_33 = arith.constant 0 : index
      %c0_34 = arith.constant 0 : index
      %58 = vector.load %arg10[%57, %c0_33, %c0_34] : memref<1x8x64xf32, #tpu.memory_space<vmem>>, vector<1x8x64xf32>
      %59 = vector.shape_cast %58 : vector<1x8x64xf32> to vector<8x64xf32>
      %c0_35 = arith.constant 0 : index
      %c0_36 = arith.constant 0 : index
      %60 = vector.load %arg9[%c0_35, %c0_36] : memref<16x64xf32, #tpu.memory_space<vmem>>, vector<8x64xf32>
      tpu.vector_store %arg9[%c0_35, %c0_36], %59 {strides = array<i32>} : memref<16x64xf32, #tpu.memory_space<vmem>>, vector<8x64xf32>,
    } else {
    }
    %c0 = arith.constant 0 : index
    %c0_5 = arith.constant 0 : index
    %c0_6 = arith.constant 0 : index
    %9 = vector.load %arg3[%c0, %c0_5, %c0_6] : memref<1x8x32xbf16, #tpu.memory_space<vmem>>, vector<1x8x32xbf16>
    %10 = vector.shape_cast %9 : vector<1x8x32xbf16> to vector<8x32xbf16>
    %c0_7 = arith.constant 0 : index
    %c0_8 = arith.constant 0 : index
    %11 = vector.load %arg4[%c0_7, %c0_8] : memref<32x64xbf16, #tpu.memory_space<vmem>>, vector<32x64xbf16>
    %cst = arith.constant dense<0.000000e+00> : vector<8x64xf32>
    %12 = tpu.matmul %10, %11, %cst {dimension_numbers = #tpu.dot_dimension_numbers<[1], [0], [0], [1], [0, 0, 1, 1], [], []>} : vector<8x32xbf16>, vector<32x64xbf16>, vector<8x64xf32> -> vector<8x64xf32>
    %c8 = arith.constant 8 : index
    %c0_9 = arith.constant 0 : index
    %13 = vector.load %arg9[%c8, %c0_9] : memref<16x64xf32, #tpu.memory_space<vmem>>, vector<8x64xf32>
    tpu.vector_store %arg9[%c8, %c0_9], %12 {strides = array<i32>} : memref<16x64xf32, #tpu.memory_space<vmem>>, vector<8x64xf32>,
    %c8_10 = arith.constant 8 : index
    %c0_11 = arith.constant 0 : index
    %14 = vector.load %arg9[%c8_10, %c0_11] : memref<16x64xf32, #tpu.memory_space<vmem>>, vector<8x64xf32>
    %15 = arith.index_cast %arg2 : i32 to index
    %c0_12 = arith.constant 0 : index
    %c0_13 = arith.constant 0 : index
    %16 = vector.load %arg10[%15, %c0_12, %c0_13] : memref<1x8x64xf32, #tpu.memory_space<vmem>>, vector<1x8x64xf32>
    %17 = vector.shape_cast %16 : vector<1x8x64xf32> to vector<8x64xf32>
    %18 = vector.shape_cast %14 : vector<8x64xf32> to vector<1x8x64xf32>
    tpu.vector_store %arg10[%15, %c0_12, %c0_13], %18 {strides = array<i32>} : memref<1x8x64xf32, #tpu.memory_space<vmem>>, vector<1x8x64xf32>,
    %c0_14 = arith.constant 0 : index
    %c0_15 = arith.constant 0 : index
    %19 = vector.load %arg5[%c0_14, %c0_15] : memref<4x64xf32, #tpu.memory_space<vmem>>, vector<4x64xf32>
    %c0_16 = arith.constant 0 : index
    %c0_17 = arith.constant 0 : index
    %20 = vector.load %arg6[%c0_16, %c0_17] : memref<1x64xf32, #tpu.memory_space<vmem>>, vector<1x64xf32>
    %c5 = arith.constant 5 : index
    %c0_18 = arith.constant 0 : index
    %21 = vector.load %arg9[%c5, %c0_18] : memref<16x64xf32, #tpu.memory_space<vmem>>, vector<8x64xf32>
    %22 = vector.extract_strided_slice %19 {offsets = [0, 0], sizes = [1, 64], strides = [1, 1]} : vector<4x64xf32> to vector<1x64xf32>
    %23 = vector.broadcast %22 : vector<1x64xf32> to vector<8x64xf32>
    %24 = arith.mulf %21, %23 : vector<8x64xf32>
    %25 = vector.broadcast %20 : vector<1x64xf32> to vector<8x64xf32>
    %26 = arith.addf %25, %24 : vector<8x64xf32>
    %c6 = arith.constant 6 : index
    %c0_19 = arith.constant 0 : index
    %27 = vector.load %arg9[%c6, %c0_19] : memref<16x64xf32, #tpu.memory_space<vmem>>, vector<8x64xf32>
    %28 = vector.extract_strided_slice %19 {offsets = [1, 0], sizes = [1, 64], strides = [1, 1]} : vector<4x64xf32> to vector<1x64xf32>
    %29 = vector.broadcast %28 : vector<1x64xf32> to vector<8x64xf32>
    %30 = arith.mulf %27, %29 : vector<8x64xf32>
    %31 = arith.addf %26, %30 : vector<8x64xf32>
    %c7 = arith.constant 7 : index
    %c0_20 = arith.constant 0 : index
    %32 = vector.load %arg9[%c7, %c0_20] : memref<16x64xf32, #tpu.memory_space<vmem>>, vector<8x64xf32>
    %33 = vector.extract_strided_slice %19 {offsets = [2, 0], sizes = [1, 64], strides = [1, 1]} : vector<4x64xf32> to vector<1x64xf32>
    %34 = vector.broadcast %33 : vector<1x64xf32> to vector<8x64xf32>
    %35 = arith.mulf %32, %34 : vector<8x64xf32>
    %36 = arith.addf %31, %35 : vector<8x64xf32>
    %c8_21 = arith.constant 8 : index
    %c0_22 = arith.constant 0 : index
    %37 = vector.load %arg9[%c8_21, %c0_22] : memref<16x64xf32, #tpu.memory_space<vmem>>, vector<8x64xf32>
    %38 = vector.extract_strided_slice %19 {offsets = [3, 0], sizes = [1, 64], strides = [1, 1]} : vector<4x64xf32> to vector<1x64xf32>
    %39 = vector.broadcast %38 : vector<1x64xf32> to vector<8x64xf32>
    %40 = arith.mulf %37, %39 : vector<8x64xf32>
    %41 = arith.addf %36, %40 : vector<8x64xf32>
    %42 = arith.negf %41 : vector<8x64xf32>
    %43 = math.exp %42 : vector<8x64xf32>
    %cst_23 = arith.constant 1.000000e+00 : f32
    %44 = vector.broadcast %cst_23 : f32 to vector<8x64xf32>
    %45 = arith.addf %44, %43 : vector<8x64xf32>
    %46 = arith.divf %44, %45 : vector<8x64xf32>
    %47 = arith.mulf %41, %46 : vector<8x64xf32>
    %c0_24 = arith.constant 0 : index
    %c0_25 = arith.constant 0 : index
    %48 = vector.load %arg11[%c0_24, %c0_25] : memref<8x32xf32, #tpu.memory_space<vmem>>, vector<8x32xf32>
    %49 = arith.truncf %47 : vector<8x64xf32> to vector<8x64xbf16>
    %c0_26 = arith.constant 0 : index
    %c0_27 = arith.constant 0 : index
    %50 = vector.load %arg7[%c0_26, %c0_27] : memref<64x32xbf16, #tpu.memory_space<vmem>>, vector<64x32xbf16>
    %cst_28 = arith.constant dense<0.000000e+00> : vector<8x32xf32>
    %51 = tpu.matmul %49, %50, %cst_28 {dimension_numbers = #tpu.dot_dimension_numbers<[1], [0], [0], [1], [0, 0, 1, 1], [], []>} : vector<8x64xbf16>, vector<64x32xbf16>, vector<8x32xf32> -> vector<8x32xf32>
    %52 = arith.addf %48, %51 : vector<8x32xf32>
    %c0_29 = arith.constant 0 : index
    %c0_30 = arith.constant 0 : index
    %53 = vector.load %arg11[%c0_29, %c0_30] : memref<8x32xf32, #tpu.memory_space<vmem>>, vector<8x32xf32>
    tpu.vector_store %arg11[%c0_29, %c0_30], %52 {strides = array<i32>} : memref<8x32xf32, #tpu.memory_space<vmem>>, vector<8x32xf32>,
    %c0_i32_31 = arith.constant 0 : i32
    %54 = arith.cmpi eq, %arg2, %c0_i32_31 : i32
    %55 = arith.extui %54 : i1 to i32
    %c0_i32_32 = arith.constant 0 : i32
    %56 = arith.cmpi ne, %55, %c0_i32_32 : i32
    scf.if %56 {
      %c0_33 = arith.constant 0 : index
      %c0_34 = arith.constant 0 : index
      %57 = vector.load %arg11[%c0_33, %c0_34] : memref<8x32xf32, #tpu.memory_space<vmem>>, vector<8x32xf32>
      %58 = arith.truncf %57 : vector<8x32xf32> to vector<8x32xbf16>
      %c0_35 = arith.constant 0 : index
      %c0_36 = arith.constant 0 : index
      %c0_37 = arith.constant 0 : index
      %59 = vector.load %arg8[%c0_35, %c0_36, %c0_37] : memref<1x8x32xbf16, #tpu.memory_space<vmem>>, vector<1x8x32xbf16>
      %60 = vector.shape_cast %59 : vector<1x8x32xbf16> to vector<8x32xbf16>
      %61 = vector.shape_cast %58 : vector<8x32xbf16> to vector<1x8x32xbf16>
      tpu.vector_store %arg8[%c0_35, %c0_36, %c0_37], %61 {strides = array<i32>} : memref<1x8x32xbf16, #tpu.memory_space<vmem>>, vector<1x8x32xbf16>,
    } else {
    }
    return
  }
  func.func @transform_0(%arg0: i32, %arg1: i32, %arg2: i32) -> (i32, i32, i32) {
    %c0_i32 = arith.constant 0 : i32
    %c0_i32_0 = arith.constant 0 : i32
    return %arg0, %arg1, %c0_i32 : i32, i32, i32
  }
  func.func @transform_1(%arg0: i32, %arg1: i32, %arg2: i32) -> (i32, i32) {
    %c0_i32 = arith.constant 0 : i32
    %c0_i32_0 = arith.constant 0 : i32
    return %c0_i32, %arg2 : i32, i32
  }
  func.func @transform_2(%arg0: i32, %arg1: i32, %arg2: i32) -> (i32, i32) {
    %c0_i32 = arith.constant 0 : i32
    %c0_i32_0 = arith.constant 0 : i32
    return %c0_i32, %arg2 : i32, i32
  }
  func.func @transform_3(%arg0: i32, %arg1: i32, %arg2: i32) -> (i32, i32) {
    %c0_i32 = arith.constant 0 : i32
    %c0_i32_0 = arith.constant 0 : i32
    return %c0_i32, %arg2 : i32, i32
  }
  func.func @transform_4(%arg0: i32, %arg1: i32, %arg2: i32) -> (i32, i32) {
    %c0_i32 = arith.constant 0 : i32
    %c0_i32_0 = arith.constant 0 : i32
    return %arg2, %c0_i32 : i32, i32
  }
  func.func @transform_5(%arg0: i32, %arg1: i32, %arg2: i32) -> (i32, i32, i32) {
    %c0_i32 = arith.constant 0 : i32
    %c0_i32_0 = arith.constant 0 : i32
    return %arg0, %arg1, %c0_i32 : i32, i32, i32
  }
}

</mosaic_0001>

<llo_original>
// kernel: tpu_custom_call.1
$region0: #{tpu_custom_call.1}
  #allocation0 [shape = 'u32[]', space=smem, size = 0x4, offset = 0x4, fixed_abs, tag = 'smem constant byte address 0x4 - core index']
  #allocation1 [shape = 'u32[144,128]{1,0:T(1,128)}', space=vmem, size = 0x12000, scoped, tag = 'internal scratch']
  #allocation2 [shape = 'f32[16,64]{1,0:T(8,128)}', space=vmem, size = 0x2000, scoped, tag = 'scratch operand']
  #allocation3 [shape = 'f32[1,8,64]{2,1,0:T(8,128)}', space=vmem, size = 0x1000, scoped, tag = 'scratch operand']
  #allocation4 [shape = 'f32[8,32]{1,0:T(8,128)}', space=vmem, size = 0x1000, scoped, tag = 'scratch operand']
  %s0 = inlined_call_operand.vmem [shape: bf16[2,16,32], index: 0, kind: input, shape index: {}]
  %s1 = inlined_call_operand.vmem [shape: bf16[32,64], index: 1, kind: input, shape index: {}]
  %s2 = inlined_call_operand.vmem [shape: f32[4,64], index: 2, kind: input, shape index: {}]
  %s3 = inlined_call_operand.vmem [shape: f32[1,64], index: 3, kind: input, shape index: {}]
  %s4 = inlined_call_operand.vmem [shape: bf16[64,32], index: 4, kind: input, shape index: {}]
  %s5 = inlined_call_operand.hbm [shape: bf16[2,16,32], index: 5, kind: output, shape index: {}]
  %s6 = sld [smem:[#allocation0]]
  $region69: #{tpu_custom_call.1} parent=0
    _
  %s8 = ssub.s32 1, %s6
  %s9 = scalar_select 0, %s8, %s6
  $region1: #{tpu_custom_call.1} parent=0
    #allocation5 [shape = 'u8[4096]{0}', space=vmem, size = 0x1000, scoped, tag = 'output window, operand 0']
    #allocation6 [shape = 's32[2]{0}', space=sflag, size = 0x8, scoped, tag = 'scoped memory for tpu_custom_call.1']
    %10 = vsyncpa [#allocation6], 0
    %s11 = scalar_lea.sflag [#allocation6], 1
    %12 = vsyncpa %s11, 0
    loop: start=0, step=1, limit=6
    $region2: #{tpu_custom_call.1} parent=1 // loop_pre_header
      _
    $region3: #{tpu_custom_call.1} parent=1 // loop_header
      %s14 = sphi 0, %s18
      %p15 = scmp.ge.s32.totalorder %s14, 6
      %s21 = sphi 0, %s40
      %s22 = sphi 0, %s36
      %s23 = sphi 0, %s32
      %s24 = sphi 0, %s21
      %s25 = sphi 0, %s22
      %s26 = sphi 0, %s23
      %s27 = sphi 0, %s24
      %s28 = sphi 0, %s25
      %s29 = sphi 0, %s26
      %s45 = sphi 0, %s47
      %s48 = sphi 0, %s45
      %s49 = sphi 0, %s48
      %s65 = sphi 0, %s49
      %s71 = sphi 0, %s73
      %s74 = sphi 0, %s71
      %s75 = sphi 0, %s74
      %s91 = sphi 0, %s75
      %s97 = sphi 0, %s99
      %s100 = sphi 0, %s97
      %s101 = sphi 0, %s100
      %s117 = sphi 0, %s101
      %s123 = sphi 0, %s125
      %s126 = sphi 0, %s123
      %s127 = sphi 0, %s126
      %s143 = sphi 0, %s127
      %s149 = sphi 0, %s151
      %s152 = sphi 0, %s149
      %s153 = sphi 0, %s152
      %s169 = sphi 0, %s153
      %s177 = sphi 0, %s179
      %s180 = sphi 0, %s177
      %s181 = sphi 0, %s180
      %s197 = sphi 0, %s181
    $region4: #{tpu_custom_call.1} parent=1 // loop_header_branch
      %17 = sbr.rel (%p15) target = $region8
    $region5: #{tpu_custom_call.1} parent=1 // loop_body
      %s19 = ssub.s32 %s14, 1
      %s20 = ssub.s32 %s14, 2
      %s30 = sadd.s32 1, %s23
      %p31 = scmp.ge.s32.totalorder %s30, 1
      %s32 = scalar_select %p31, 0, %s30
      %s33 = sadd.s32 1, %s22
      %s34 = scalar_select %p31, %s33, %s22
      %p35 = scmp.ge.s32.totalorder %s34, 2
      %s36 = scalar_select %p35, 0, %s34
      %s37 = sadd.s32 1, %s21
      %s38 = scalar_select %p35, %s37, %s21
      %p39 = scmp.ge.s32.totalorder %s38, 2
      %s40 = scalar_select %p39, 0, %s38
      %s41 = ssub.s32 %s21, %s40
      %s42 = ssub.s32 %s22, %s36
      %s43 = sor.u32 %s41, %s42
      %p44 = scmp.eq.s32.totalorder %s43, 0
      %s46 = sadd.s32 %s45, 1
      %s47 = scalar_select %p44, %s45, %s46
      %p50 = pneg %p44
      %p51 = scmp.eq.s32.totalorder %s14, 3
      %p52 = por %p50, %p51
      %p53 = scmp.ne.s32.totalorder %s45, %s48
      %p54 = scmp.eq.s32.totalorder %s14, 0
      %p55 = por %p53, %p54
      %p56 = scmp.ne.s32.totalorder %s45, %s48
      %p57 = scmp.eq.s32.totalorder %s19, 3
      %p58 = por %p56, %p57
      %p59 = scmp.ne.s32.totalorder %s48, %s49
      %p60 = scmp.eq.s32.totalorder %s19, 0
      %p61 = por %p59, %p60
      %p62 = scmp.ne.s32.totalorder %s48, %s49
      %p63 = scmp.eq.s32.totalorder %s20, 3
      %p64 = por %p62, %p63
      %p66 = scmp.ne.s32.totalorder %s49, %s65
      %p67 = scmp.eq.s32.totalorder %s20, 0
      %p68 = por %p66, %p67
      %s69 = ssub.s32 %s23, %s32
      %p70 = scmp.eq.s32.totalorder %s69, 0
      %s72 = sadd.s32 %s71, 1
      %s73 = scalar_select %p70, %s71, %s72
      %p76 = pneg %p70
      %p77 = scmp.eq.s32.totalorder %s14, 3
      %p78 = por %p76, %p77
      %p79 = scmp.ne.s32.totalorder %s71, %s74
      %p80 = scmp.eq.s32.totalorder %s14, 0
      %p81 = por %p79, %p80
      %p82 = scmp.ne.s32.totalorder %s71, %s74
      %p83 = scmp.eq.s32.totalorder %s19, 3
      %p84 = por %p82, %p83
      %p85 = scmp.ne.s32.totalorder %s74, %s75
      %p86 = scmp.eq.s32.totalorder %s19, 0
      %p87 = por %p85, %p86
      %p88 = scmp.ne.s32.totalorder %s74, %s75
      %p89 = scmp.eq.s32.totalorder %s20, 3
      %p90 = por %p88, %p89
      %p92 = scmp.ne.s32.totalorder %s75, %s91
      %p93 = scmp.eq.s32.totalorder %s20, 0
      %p94 = por %p92, %p93
      %s95 = ssub.s32 %s23, %s32
      %p96 = scmp.eq.s32.totalorder %s95, 0
      %s98 = sadd.s32 %s97, 1
      %s99 = scalar_select %p96, %s97, %s98
      %p102 = pneg %p96
      %p103 = scmp.eq.s32.totalorder %s14, 3
      %p104 = por %p102, %p103
      %p105 = scmp.ne.s32.totalorder %s97, %s100
      %p106 = scmp.eq.s32.totalorder %s14, 0
      %p107 = por %p105, %p106
      %p108 = scmp.ne.s32.totalorder %s97, %s100
      %p109 = scmp.eq.s32.totalorder %s19, 3
      %p110 = por %p108, %p109
      %p111 = scmp.ne.s32.totalorder %s100, %s101
      %p112 = scmp.eq.s32.totalorder %s19, 0
      %p113 = por %p111, %p112
      %p114 = scmp.ne.s32.totalorder %s100, %s101
      %p115 = scmp.eq.s32.totalorder %s20, 3
      %p116 = por %p114, %p115
      %p118 = scmp.ne.s32.totalorder %s101, %s117
      %p119 = scmp.eq.s32.totalorder %s20, 0
      %p120 = por %p118, %p119
      %s121 = ssub.s32 %s23, %s32
      %p122 = scmp.eq.s32.totalorder %s121, 0
      %s124 = sadd.s32 %s123, 1
      %s125 = scalar_select %p122, %s123, %s124
      %p128 = pneg %p122
      %p129 = scmp.eq.s32.totalorder %s14, 3
      %p130 = por %p128, %p129
      %p131 = scmp.ne.s32.totalorder %s123, %s126
      %p132 = scmp.eq.s32.totalorder %s14, 0
      %p133 = por %p131, %p132
      %p134 = scmp.ne.s32.totalorder %s123, %s126
      %p135 = scmp.eq.s32.totalorder %s19, 3
      %p136 = por %p134, %p135
      %p137 = scmp.ne.s32.totalorder %s126, %s127
      %p138 = scmp.eq.s32.totalorder %s19, 0
      %p139 = por %p137, %p138
      %p140 = scmp.ne.s32.totalorder %s126, %s127
      %p141 = scmp.eq.s32.totalorder %s20, 3
      %p142 = por %p140, %p141
      %p144 = scmp.ne.s32.totalorder %s127, %s143
      %p145 = scmp.eq.s32.totalorder %s20, 0
      %p146 = por %p144, %p145
      %s147 = ssub.s32 %s23, %s32
      %p148 = scmp.eq.s32.totalorder %s147, 0
      %s150 = sadd.s32 %s149, 1
      %s151 = scalar_select %p148, %s149, %s150
      %p154 = pneg %p148
      %p155 = scmp.eq.s32.totalorder %s14, 3
      %p156 = por %p154, %p155
      %p157 = scmp.ne.s32.totalorder %s149, %s152
      %p158 = scmp.eq.s32.totalorder %s14, 0
      %p159 = por %p157, %p158
      %p160 = scmp.ne.s32.totalorder %s149, %s152
      %p161 = scmp.eq.s32.totalorder %s19, 3
      %p162 = por %p160, %p161
      %p163 = scmp.ne.s32.totalorder %s152, %s153
      %p164 = scmp.eq.s32.totalorder %s19, 0
      %p165 = por %p163, %p164
      %p166 = scmp.ne.s32.totalorder %s152, %s153
      %p167 = scmp.eq.s32.totalorder %s20, 3
      %p168 = por %p166, %p167
      %p170 = scmp.ne.s32.totalorder %s153, %s169
      %p171 = scmp.eq.s32.totalorder %s20, 0
      %p172 = por %p170, %p171
      %s173 = ssub.s32 %s21, %s40
      %s174 = ssub.s32 %s22, %s36
      %s175 = sor.u32 %s173, %s174
      %p176 = scmp.eq.s32.totalorder %s175, 0
      %s178 = sadd.s32 %s177, 1
      %s179 = scalar_select %p176, %s177, %s178
      %p182 = pneg %p176
      %p183 = scmp.eq.s32.totalorder %s14, 3
      %p184 = por %p182, %p183
      %p185 = scmp.ne.s32.totalorder %s177, %s180
      %p186 = scmp.eq.s32.totalorder %s14, 0
      %p187 = por %p185, %p186
      %p188 = scmp.ne.s32.totalorder %s177, %s180
      %p189 = scmp.eq.s32.totalorder %s19, 3
      %p190 = por %p188, %p189
      %p191 = scmp.ne.s32.totalorder %s180, %s181
      %p192 = scmp.eq.s32.totalorder %s19, 0
      %p193 = por %p191, %p192
      %p194 = scmp.ne.s32.totalorder %s180, %s181
      %p195 = scmp.eq.s32.totalorder %s20, 3
      %p196 = por %p194, %p195
      %p198 = scmp.ne.s32.totalorder %s181, %s197
      %p199 = scmp.eq.s32.totalorder %s20, 0
      %p200 = por %p198, %p199
      %p201 = scmp.le.s32.totalorder 1, %s14
      %p202 = scmp.lt.s32.totalorder %s14, 5
      %p203 = pnand %p201, %p202
      %p204 = pneg %p203
      // Predicated region
      $region9: #{tpu_custom_call.1} parent=5 // pred_check
        _
      $region10: #{tpu_custom_call.1} parent=5 // pred_check_branch
        %206 = sbr.rel (%p203) target = $region12
      $region11: #{tpu_custom_call.1} parent=5 // pred_region
        %s207 = ssub.s32 %s14, 1
        // Predicated region
        $region13: #{tpu_custom_call.1} parent=11 // pred_check
          %p208 = pneg %p87
        $region14: #{tpu_custom_call.1} parent=11 // pred_check_branch
          %210 = sbr.rel (%p208) target = $region16
        $region15: #{tpu_custom_call.1} parent=11 // pred_region
          %p211 = scmp.lt.s32.totalorder %s26, 0
          %s212 = scalar_select %p211, %s26, 0
          %s213 = smul.addr %s212, 4
          %s214 = scalar_lea.vmem %s1, %s213
        $region16: #{tpu_custom_call.1} parent=11 // pred_fallthru
          _
        // Predicated region
        $region17: #{tpu_custom_call.1} parent=11 // pred_check
          %p215 = pneg %p113
        $region18: #{tpu_custom_call.1} parent=11 // pred_check_branch
          %217 = sbr.rel (%p215) target = $region20
        $region19: #{tpu_custom_call.1} parent=11 // pred_region
          %p218 = scmp.lt.s32.totalorder %s26, 0
          %s219 = scalar_select %p218, %s26, 0
          %s220 = smul.addr %s219, 4
          %s221 = scalar_lea.vmem %s2, %s220
        $region20: #{tpu_custom_call.1} parent=11 // pred_fallthru
          _
        // Predicated region
        $region21: #{tpu_custom_call.1} parent=11 // pred_check
          %p222 = pneg %p139
        $region22: #{tpu_custom_call.1} parent=11 // pred_check_branch
          %224 = sbr.rel (%p222) target = $region24
        $region23: #{tpu_custom_call.1} parent=11 // pred_region
          %p225 = scmp.lt.s32.totalorder %s26, 0
          %s226 = scalar_select %p225, %s26, 0
          %s227 = scalar_lea.vmem %s3, %s226
        $region24: #{tpu_custom_call.1} parent=11 // pred_fallthru
          _
        // Predicated region
        $region25: #{tpu_custom_call.1} parent=11 // pred_check
          %p228 = pneg %p165
        $region26: #{tpu_custom_call.1} parent=11 // pred_check_branch
          %230 = sbr.rel (%p228) target = $region28
        $region27: #{tpu_custom_call.1} parent=11 // pred_region
          %s231 = smul.u32 8, %s26
          %p232 = scmp.lt.s32.totalorder %s231, 7
          %s233 = scalar_select %p232, %s231, 7
          %s234 = smul.addr %s233, 4
          %s235 = scalar_lea.vmem %s4, %s234
          %s236 = smul.u32 8, %s26
        $region28: #{tpu_custom_call.1} parent=11 // pred_fallthru
          _
      $region12: #{tpu_custom_call.1} parent=5 // pred_fallthru
        _
      %p237 = scmp.lt.s32.totalorder %s14, 4
      // Predicated region
      $region29: #{tpu_custom_call.1} parent=5 // pred_check
        %p238 = pneg %p237
      $region30: #{tpu_custom_call.1} parent=5 // pred_check_branch
        %240 = sbr.rel (%p238) target = $region32
      $region31: #{tpu_custom_call.1} parent=5 // pred_region
        // Predicated region
        $region33: #{tpu_custom_call.1} parent=31 // pred_check
          %p241 = pneg %p55
        $region34: #{tpu_custom_call.1} parent=31 // pred_check_branch
          %243 = sbr.rel (%p241) target = $region36
        $region35: #{tpu_custom_call.1} parent=31 // pred_region
          %p244 = scmp.lt.s32.totalorder %s21, 1
          %s245 = scalar_select %p244, %s21, 1
          %p246 = scmp.lt.s32.totalorder %s22, 1
          %s247 = scalar_select %p246, %s22, 1
          %s248 = smul.addr %s245, 2
          %s249 = sadd.s32 %s247, %s248
          %s250 = smul.addr %s249, 4
          %s251 = scalar_lea.vmem %s0, %s250
        $region36: #{tpu_custom_call.1} parent=31 // pred_fallthru
          _
      $region32: #{tpu_custom_call.1} parent=5 // pred_fallthru
        _
      %p252 = scmp.le.s32.totalorder 1, %s14
      %p253 = scmp.lt.s32.totalorder %s14, 5
      %p254 = pnand %p252, %p253
      %p255 = pneg %p254
      // Predicated region
      $region37: #{tpu_custom_call.1} parent=5 // pred_check
        _
      $region38: #{tpu_custom_call.1} parent=5 // pred_check_branch
        %257 = sbr.rel (%p254) target = $region40
      $region39: #{tpu_custom_call.1} parent=5 // pred_region
        %s258 = ssub.s32 %s14, 1
        %p259 = scmp.lt.s32.totalorder %s24, 1
        %s260 = scalar_select %p259, %s24, 1
        %p261 = scmp.lt.s32.totalorder %s25, 1
        %s262 = scalar_select %p261, %s25, 1
        %s263 = smul.addr %s260, 2
        %s264 = sadd.s32 %s262, %s263
        %s265 = smul.addr %s264, 4
        %s266 = scalar_lea.vmem %s0, %s265
        %p267 = pneg %p61
        %p268 = pneg %p58
        %p269 = scmp.lt.s32.totalorder %s26, 0
        %s270 = scalar_select %p269, %s26, 0
        %s271 = smul.addr %s270, 4
        %s272 = scalar_lea.vmem %s1, %s271
        %p273 = pneg %p87
        %p274 = pneg %p84
        %p275 = scmp.lt.s32.totalorder %s26, 0
        %s276 = scalar_select %p275, %s26, 0
        %s277 = smul.addr %s276, 4
        %s278 = scalar_lea.vmem %s2, %s277
        %p279 = pneg %p113
        %p280 = pneg %p110
        %p281 = scmp.lt.s32.totalorder %s26, 0
        %s282 = scalar_select %p281, %s26, 0
        %s283 = scalar_lea.vmem %s3, %s282
        %p284 = pneg %p139
        %p285 = pneg %p136
        %s286 = smul.u32 8, %s26
        %p287 = scmp.lt.s32.totalorder %s286, 7
        %s288 = scalar_select %p287, %s286, 7
        %s289 = smul.addr %s288, 4
        %s290 = scalar_lea.vmem %s4, %s289
        %p291 = pneg %p165
        %p292 = pneg %p162
        %p293 = pneg %p193
        %p294 = pneg %p190
        %s295 = sand.u32 %s180, 1
        %s296 = scalar_lea.sflag [#allocation6], %s295
        %s297 = sand.u32 %s180, 1
        %s298 = smul.addr %s297, 4
        %s299 = scalar_lea.vmem [#allocation5], %s298
        %p300 = scmp.lt.s32.totalorder %s24, 1
        %s301 = scalar_select %p300, %s24, 1
        %p302 = scmp.lt.s32.totalorder %s25, 1
        %s303 = scalar_select %p302, %s25, 1
        %s304 = smul.addr %s301, 2
        %s305 = sadd.s32 %s303, %s304
        %s306 = smul.addr %s305, 4
        %s307 = scalar_lea.vmem %s0, %s306
        %p308 = scmp.lt.s32.totalorder %s26, 0
        %s309 = scalar_select %p308, %s26, 0
        %s310 = smul.addr %s309, 4
        %s311 = scalar_lea.vmem %s1, %s310
        %p312 = scmp.lt.s32.totalorder %s26, 0
        %s313 = scalar_select %p312, %s26, 0
        %s314 = smul.addr %s313, 4
        %s315 = scalar_lea.vmem %s2, %s314
        %p316 = scmp.lt.s32.totalorder %s26, 0
        %s317 = scalar_select %p316, %s26, 0
        %s318 = scalar_lea.vmem %s3, %s317
        %s319 = smul.u32 8, %s26
        %p320 = scmp.lt.s32.totalorder %s319, 7
        %s321 = scalar_select %p320, %s319, 7
        %s322 = smul.addr %s321, 4
        %s323 = scalar_lea.vmem %s4, %s322
        %s324 = smul.u32 8, %s26
        %p326 = scmp.eq.s32.totalorder %s26, 0
        // Predicated region
        $region41: #{tpu_custom_call.1} parent=39 // pred_check
          %p327 = pneg %p326
        $region42: #{tpu_custom_call.1} parent=39 // pred_check_branch
          %329 = sbr.rel (%p327) target = $region44
        $region43: #{tpu_custom_call.1} parent=39 // pred_region
          %vm330 = vcmask 261120
          %331 = vst.msk [vmem:[#allocation4] sm:$0xff] %vm330, 0.0
        $region44: #{tpu_custom_call.1} parent=39 // pred_fallthru
          _
        %p332 = scmp.eq.s32.totalorder %s25, 0
        // Predicated region
        $region45: #{tpu_custom_call.1} parent=39 // pred_check
          %p333 = pneg %p332
        $region46: #{tpu_custom_call.1} parent=39 // pred_check_branch
          %335 = sbr.rel (%p333) target = $region48
        $region47: #{tpu_custom_call.1} parent=39 // pred_region
          %vm336 = vcmask 523264
          %337 = vst.msk [vmem:[#allocation2] sm:$0xff] %vm336, 0.0
        $region48: #{tpu_custom_call.1} parent=39 // pred_fallthru
          _
        %p338 = scmp.gt.s32.totalorder %s25, 0
        // Predicated region
        $region49: #{tpu_custom_call.1} parent=39 // pred_check
          %p339 = pneg %p338
        $region50: #{tpu_custom_call.1} parent=39 // pred_check_branch
          %341 = sbr.rel (%p339) target = $region52
        $region51: #{tpu_custom_call.1} parent=39 // pred_region
          %s342 = smul.u32 %s26, 8
          %s343 = scalar_lea.vmem [#allocation3], %s342
          %v344 = vld [vmem:[%s343] sm:$0xff]
          %vm345 = vcmask 523264
          %346 = vst.msk [vmem:[#allocation2] sm:$0xff] %vm345, %v344
        $region52: #{tpu_custom_call.1} parent=39 // pred_fallthru
          _
        %v347 = vld [vmem:[%s307] sm:$0xf]
        %v348 = vld [vmem:[%s311] sm:$0xf]
        %v349 = vld [vmem:[%s311 + $0x4] sm:$0xf]
        %v350 = vld [vmem:[%s311 + $0x8] sm:$0xf]
        %v351 = vld [vmem:[%s311 + $0xc] sm:$0xf]
        %v356 = vunpack.c.l.b16 %v348
        %v357 = vunpack.c.l.b16 %v349
        %v358 = vunpack.c.l.b16 %v350
        %v359 = vunpack.c.l.b16 %v351
        %v360 = vpack.c.b16 %v357, %v356
        %v361 = vpack.c.b16 %v359, %v358
        %vm364 = vcmask 261120
        %v366 = vsel %vm364, %v347, 0
        %368 = vmatprep.subr.bf16.mxu0 0
        %369 = vmatpush1.bf16.msra.mxu0 0
        %370 = vmatprep.subr.bf16.mxu0 0
        %371 = vmatpush1.bf16.msra.mxu0 0
        %372 = vmatprep.subr.bf16.mxu0 0
        %373 = vmatpush1.bf16.msra.mxu0 0
        %374 = vmatprep.subr.bf16.mxu0 0
        %375 = vmatpush1.bf16.msra.mxu0 0
        %376 = vmatprep.subr.bf16.mxu0 0
        %377 = vmatpush1.bf16.msra.mxu0 0
        %378 = vmatprep.subr.bf16.mxu0 0
        %379 = vmatpush1.bf16.msra.mxu0 0
        %380 = vmatprep.subr.bf16.mxu0 0
        %381 = vmatpush1.bf16.msra.mxu0 %v361
        %382 = vmatprep.subr.bf16.mxu0 0
        %383 = vmatpush1.bf16.msra.mxu0 %v360
        %384 = vmatprep.subr.bf16.mxu0 0
        %385 = vmatpush2.bf16.msra.mxu0 0
        %386 = vmatprep.subr.bf16.mxu0 0
        %387 = vmatpush2.bf16.msra.mxu0 0
        %388 = vmatprep.subr.bf16.mxu0 0
        %389 = vmatpush2.bf16.msra.mxu0 0
        %390 = vmatprep.subr.bf16.mxu0 0
        %391 = vmatpush2.bf16.msra.mxu0 0
        %392 = vmatprep.subr.bf16.mxu0 0
        %393 = vmatpush2.bf16.msra.mxu0 0
        %394 = vmatprep.subr.bf16.mxu0 0
        %395 = vmatpush2.bf16.msra.mxu0 0
        %396 = vmatprep.subr.bf16.mxu0 0
        %397 = vmatpush2.bf16.msra.mxu0 0
        %398 = vmatprep.subr.bf16.mxu0 0
        %399 = vmatpush2.bf16.msra.mxu0 0
        %400 = vmatprep.mubr.bf16.mxu0 0
        %401 = vmatmul.mubr.bf16.gmra.mxu0 %v366
        %v402 = vpop.f32.mrf.mxu0
        %v403 = vadd.f32 0.0, %v402
        %v404 = vpop.f32.mrf.mxu0
        %v405 = vpop.f32.mrf.mxu0
        %v406 = vpop.f32.mrf.mxu0
        %407 = vdwg.mxu0
        %vm408 = vcmask 523264
        %409 = vst.msk [vmem:[#allocation2 + $0x8] sm:$0xff] %vm408, %v403
        %v410 = vld [vmem:[#allocation2 + $0x8] sm:$0xff]
        %s411 = smul.u32 %s26, 8
        %s412 = scalar_lea.vmem [#allocation3], %s411
        %413 = vst.msk [vmem:[%s412] sm:$0xff] %vm408, %v410
        %v414 = vld [vmem:[%s315] sm:$0xf]
        %v415 = vld [vmem:[%s318] sm:$0x1]
        %v416 = vld [vmem:[#allocation2 + $0x5] sm:$0xff]
        %v417 = vlaneseq
        %v418 = vshrl.u32 %v417, 7
        %v419 = vsub.s32 0, %v418
        %v420 = vrot.slane %v414, %v419
        %v421 = vmul.f32 %v416, %v420
        %v423 = vlaneseq
        %v424 = vshrl.u32 %v423, 7
        %v425 = vsub.s32 0, %v424
        %v426 = vrot.slane %v415, %v425
        %v428 = vadd.f32 %v426, %v421
        %v429 = vld [vmem:[#allocation2 + $0x6] sm:$0xff]
        %v430 = vlaneseq
        %v431 = vshrl.u32 %v430, 7
        %v432 = vsub.s32 1, %v431
        %v433 = vrot.slane %v414, %v432
        %v434 = vmul.f32 %v429, %v433
        %v435 = vadd.f32 %v428, %v434
        %v436 = vld [vmem:[#allocation2 + $0x7] sm:$0xff]
        %v437 = vlaneseq
        %v438 = vshrl.u32 %v437, 7
        %v439 = vsub.s32 2, %v438
        %v440 = vrot.slane %v414, %v439
        %v441 = vmul.f32 %v436, %v440
        %v442 = vadd.f32 %v435, %v441
        %v443 = vld [vmem:[#allocation2 + $0x8] sm:$0xff]
        %v444 = vlaneseq
        %v445 = vshrl.u32 %v444, 7
        %v446 = vsub.s32 3, %v445
        %v447 = vrot.slane %v414, %v446
        %v448 = vmul.f32 %v443, %v447
        %v449 = vadd.f32 %v442, %v448
        %v450 = vxor.u32 %v449, 2147483648
        %v451 = vmul.f32 %v450, 1.442695
        %v452 = vpow.pop %v451
        %v453 = vadd.f32 %v452, 1.0
        %v454 = vrcp.pop %v453
        %v455 = vmul.f32 1.0, %v454
        %v456 = vmul.f32 %v449, %v455
        %v457 = vld [vmem:[#allocation4] sm:$0xff]
        %v458 = vpack.c.bf16 %v456, %v456
        %v459 = vld [vmem:[%s323] sm:$0xf]
        %v460 = vld [vmem:[%s323 + $0x4] sm:$0xf]
        %v461 = vld [vmem:[%s323 + $0x8] sm:$0xf]
        %v462 = vld [vmem:[%s323 + $0xc] sm:$0xf]
        %v463 = vld [vmem:[%s323 + $0x10] sm:$0xf]
        %v464 = vld [vmem:[%s323 + $0x14] sm:$0xf]
        %v465 = vld [vmem:[%s323 + $0x18] sm:$0xf]
        %v466 = vld [vmem:[%s323 + $0x1c] sm:$0xf]
        %v475 = vunpack.c.l.b16 %v459
        %v476 = vunpack.c.l.b16 %v460
        %v477 = vunpack.c.l.b16 %v461
        %v478 = vunpack.c.l.b16 %v462
        %v479 = vunpack.c.l.b16 %v463
        %v480 = vunpack.c.l.b16 %v464
        %v481 = vunpack.c.l.b16 %v465
        %v482 = vunpack.c.l.b16 %v466
        %v483 = vpack.c.b16 %v476, %v475
        %v484 = vpack.c.b16 %v478, %v477
        %v485 = vpack.c.b16 %v480, %v479
        %v486 = vpack.c.b16 %v482, %v481
        %v492 = vsel %vm408, %v458, 0
        %494 = vmatprep.subr.bf16.mxu0 0
        %495 = vmatpush1.bf16.msra.mxu0 0
        %496 = vmatprep.subr.bf16.mxu0 0
        %497 = vmatpush1.bf16.msra.mxu0 0
        %498 = vmatprep.subr.bf16.mxu0 0
        %499 = vmatpush1.bf16.msra.mxu0 0
        %500 = vmatprep.subr.bf16.mxu0 0
        %501 = vmatpush1.bf16.msra.mxu0 0
        %502 = vmatprep.subr.bf16.mxu0 0
        %503 = vmatpush1.bf16.msra.mxu0 %v486
        %504 = vmatprep.subr.bf16.mxu0 0
        %505 = vmatpush1.bf16.msra.mxu0 %v485
        %506 = vmatprep.subr.bf16.mxu0 0
        %507 = vmatpush1.bf16.msra.mxu0 %v484
        %508 = vmatprep.subr.bf16.mxu0 0
        %509 = vmatpush1.bf16.msra.mxu0 %v483
        %510 = vmatprep.subr.bf16.mxu0 0
        %511 = vmatpush2.bf16.msra.mxu0 0
        %512 = vmatprep.subr.bf16.mxu0 0
        %513 = vmatpush2.bf16.msra.mxu0 0
        %514 = vmatprep.subr.bf16.mxu0 0
        %515 = vmatpush2.bf16.msra.mxu0 0
        %516 = vmatprep.subr.bf16.mxu0 0
        %517 = vmatpush2.bf16.msra.mxu0 0
        %518 = vmatprep.subr.bf16.mxu0 0
        %519 = vmatpush2.bf16.msra.mxu0 0
        %520 = vmatprep.subr.bf16.mxu0 0
        %521 = vmatpush2.bf16.msra.mxu0 0
        %522 = vmatprep.subr.bf16.mxu0 0
        %523 = vmatpush2.bf16.msra.mxu0 0
        %524 = vmatprep.subr.bf16.mxu0 0
        %525 = vmatpush2.bf16.msra.mxu0 0
        %526 = vmatprep.mubr.bf16.mxu0 0
        %527 = vmatmul.mubr.bf16.gmra.mxu0 %v492
        %v528 = vpop.f32.mrf.mxu0
        %v529 = vadd.f32 0.0, %v528
        %v530 = vpop.f32.mrf.mxu0
        %v531 = vpop.f32.mrf.mxu0
        %v532 = vpop.f32.mrf.mxu0
        %533 = vdwg.mxu0
        %v534 = vadd.f32 %v457, %v529
        %535 = vst.msk [vmem:[#allocation4] sm:$0xff] %vm364, %v534
        // Predicated region
        $region53: #{tpu_custom_call.1} parent=39 // pred_check
          %p536 = pneg %p326
        $region54: #{tpu_custom_call.1} parent=39 // pred_check_branch
          %538 = sbr.rel (%p536) target = $region56
        $region55: #{tpu_custom_call.1} parent=39 // pred_region
          %v539 = vld [vmem:[#allocation4] sm:$0xff]
          %v540 = vpack.c.bf16 %v539, %v539
          %vm541 = vcmask 257024
          %542 = vst.msk [vmem:[%s299] sm:$0xf] %vm541, %v540
        $region56: #{tpu_custom_call.1} parent=39 // pred_fallthru
          _
        %s543 = sand.u32 %s180, 1
        %s544 = scalar_lea.sflag [#allocation6], %s543
        %s545 = sand.u32 %s180, 1
        %s546 = smul.addr %s545, 4
        %s547 = scalar_lea.vmem [#allocation5], %s546
        // Predicated region
        $region57: #{tpu_custom_call.1} parent=39 // pred_check
          %p548 = pneg %p190
        $region58: #{tpu_custom_call.1} parent=39 // pred_check_branch
          %550 = sbr.rel (%p548) target = $region60
        $region59: #{tpu_custom_call.1} parent=39 // pred_region
          %s552 = ssub.s32 64, 64
          %553 = vsyncadd %s544, %s552
          %s554 = smul.addr %s24, 2
          %s555 = sadd.s32 %s25, %s554
          %s556 = smul.addr %s555, 64
          %s557 = scalar_lea.hbm %s5, %s556
          %s559 = sshll.u32 %s547, 4
          %s560 = int_to_ptr.vmem [resolvable:$true] %s559
          %562 = dma.vmem_to_hbm [thread:$0]  %s560, 64, %s557, %s544
        $region60: #{tpu_custom_call.1} parent=39 // pred_fallthru
          _
      $region40: #{tpu_custom_call.1} parent=5 // pred_fallthru
        _
      %p563 = scmp.le.s32.totalorder 2, %s14
      // Predicated region
      $region61: #{tpu_custom_call.1} parent=5 // pred_check
        %p564 = pneg %p563
      $region62: #{tpu_custom_call.1} parent=5 // pred_check_branch
        %566 = sbr.rel (%p564) target = $region64
      $region63: #{tpu_custom_call.1} parent=5 // pred_region
        %s567 = ssub.s32 %s14, 2
        // Predicated region
        $region65: #{tpu_custom_call.1} parent=63 // pred_check
          %p568 = pneg %p196
        $region66: #{tpu_custom_call.1} parent=63 // pred_check_branch
          %570 = sbr.rel (%p568) target = $region68
        $region67: #{tpu_custom_call.1} parent=63 // pred_region
          %s571 = sand.u32 %s181, 1
          %s572 = scalar_lea.sflag [#allocation6], %s571
          %s573 = sand.u32 %s181, 1
          %s574 = smul.addr %s573, 4
          %s575 = scalar_lea.vmem [#allocation5], %s574
          %576 = dma.done %s572, 64
        $region68: #{tpu_custom_call.1} parent=63 // pred_fallthru
          _
      $region64: #{tpu_custom_call.1} parent=5 // pred_fallthru
        _
    $region6: #{tpu_custom_call.1} parent=1 // loop_footer
      %s18 = sadd.s32 1, %s14
    $region7: #{tpu_custom_call.1} parent=1 // loop_footer_branch
      %13 = sbr.rel target = $region3
    $region8: #{tpu_custom_call.1} parent=1 // loop_exit
      _
    %577 = vsyncpa [#allocation6], 1
    %s578 = scalar_lea.sflag [#allocation6], 1
    %579 = vsyncpa %s578, 1

</llo_original>
